<compile_context>
chip_gen: v7x
topology: tpu7x:2x2x1
jax: 0.10.0
libtpu: 0.0.40
codegen_flags: <defaults>
</compile_context>

<pallas_src>
import jax
import jax.numpy as jnp
from jax.experimental import pallas as pl
from jax.experimental.pallas import tpu as pltpu


def _round_up(x: int, m: int) -> int:
    return ((x + m - 1) // m) * m


# ----------------------------------------------------------------------------
# Pallas kernel: tiled matmul with bias folded into the K==0 accumulator init
# ----------------------------------------------------------------------------
def _linear_kernel(x_ref, w_ref, b_ref, o_ref, acc_ref):
    # x_ref: [tm, tk] bf16   w_ref: [tk, tn] bf16   b_ref: [1, tn] f32
    # o_ref: [tm, tn] out dtype   acc_ref: [tm, tn] f32 (resident across K)
    k = pl.program_id(2)

    @pl.when(k == 0)
    def _init():
        # Initialize the accumulator with the (broadcast) bias: the final step then
        # only needs a cast + unmasked lane-dense store.
        acc_ref[...] = jnp.broadcast_to(
            b_ref[...].astype(jnp.float32), acc_ref.shape
        )

    acc_ref[...] += jnp.dot(
        x_ref[...], w_ref[...], preferred_element_type=jnp.float32
    )

    @pl.when(k == pl.num_programs(2) - 1)
    def _finalize():
        o_ref[...] = acc_ref[...].astype(o_ref.dtype)


# ----------------------------------------------------------------------------
# JAX-side "layers"
# ----------------------------------------------------------------------------
class PallasLinear:
    """nn.Linear(in_features, out_features) with a tiled Pallas MXU matmul kernel."""

    def __init__(self, in_features: int, out_features: int, *,
                 param_dtype=jnp.bfloat16, tm=256, tn=256, tk=512, seed=42):
        self.in_features = in_features
        self.out_features = out_features
        self.param_dtype = param_dtype

        # Tile sizes: lane-dense (multiples of 128) on the N/K axes, capped at MXU-friendly
        # sizes; never larger than the (padded) problem so we don't over-pad tiny shapes.
        self.tn = min(tn, _round_up(out_features, 128))
        self.tk = min(tk, _round_up(in_features, 128))
        self._tm_max = tm

        # Padded parameter extents (multiples of the tile sizes -> unmasked stores/DMA).
        self.k_pad = _round_up(in_features, self.tk)
        self.n_pad = _round_up(out_features, self.tn)

        # Deterministic synthetic init mirroring PyTorch Linear shapes
        # (weight [out, in], bias [out]); stored pre-transposed + zero-padded.
        kw, kb = jax.random.split(jax.random.PRNGKey(seed))
        bound = 1.0 / (in_features ** 0.5)
        w = jax.random.uniform(kw, (out_features, in_features), jnp.float32, -bound, bound)
        b = jax.random.uniform(kb, (out_features,), jnp.float32, -bound, bound)

        w_t = jnp.pad(w.T, ((0, self.k_pad - in_features), (0, self.n_pad - out_features)))
        self.w_t = w_t.astype(param_dtype)                  # [K_pad, N_pad] bf16
        self.b = jnp.pad(b, (0, self.n_pad - out_features)).reshape(1, -1)  # [1, N_pad] f32

    def __call__(self, x):
        batch, in_f = x.shape
        assert in_f == self.in_features, "input feature mismatch"
        out_dtype = x.dtype

        # M tile: multiple of 16 (bf16 sublane packing), capped at tm_max.
        tm = min(self._tm_max, _round_up(max(batch, 1), 16))
        m_pad = _round_up(batch, tm)

        # Host-side pad + bf16 cast: keeps every block 128-aligned / unmasked in-kernel.
        x_p = x.astype(self.param_dtype)
        if m_pad != batch or self.k_pad != in_f:
            x_p = jnp.pad(x_p, ((0, m_pad - batch), (0, self.k_pad - in_f)))

        grid = (m_pad // tm, self.n_pad // self.tn, self.k_pad // self.tk)

        itemsize = jnp.dtype(self.param_dtype).itemsize
        flops = 2 * m_pad * self.n_pad * self.k_pad
        bytes_accessed = (m_pad * self.k_pad * itemsize          # x
                          + self.k_pad * self.n_pad * itemsize   # W
                          + self.n_pad * 4                       # bias (f32)
                          + m_pad * self.n_pad * jnp.dtype(out_dtype).itemsize)  # out

        out = pl.pallas_call(
            _linear_kernel,
            out_shape=jax.ShapeDtypeStruct((m_pad, self.n_pad), out_dtype),
            grid_spec=pltpu.PrefetchScalarGridSpec(
                num_scalar_prefetch=0,
                grid=grid,
                in_specs=[
                    pl.BlockSpec((tm, self.tk), lambda i, j, k: (i, k)),        # x tile
                    pl.BlockSpec((self.tk, self.tn), lambda i, j, k: (k, j)),   # W tile
                    pl.BlockSpec((1, self.tn), lambda i, j, k: (0, j)),         # bias tile
                ],
                out_specs=pl.BlockSpec((tm, self.tn), lambda i, j, k: (i, j)),
                scratch_shapes=[pltpu.VMEM((tm, self.tn), jnp.float32)],
            ),
            compiler_params=pltpu.CompilerParams(
                dimension_semantics=("parallel", "parallel", "arbitrary"),
            ),
            cost_estimate=pl.CostEstimate(
                flops=flops, transcendentals=0, bytes_accessed=bytes_accessed
            ),
        )(x_p, self.w_t, self.b)

        # Slice padding back off.
        if m_pad != batch or self.n_pad != self.out_features:
            out = out[:batch, :self.out_features]
        return out


class PallasIdentity:
    """Identity layer: a pure pass-through has no work, so no kernel is launched."""

    def __call__(self, x):
        return x


class PassThroughLayer:
    """JAX/Pallas equivalent of the PyTorch PassThroughLayer: forwards to wrapped layer."""

    def __init__(self, layer):
        self.layer = layer

    def __call__(self, *args, **kwargs):
        return self.layer(*args, **kwargs)


# ----------------------------------------------------------------------------
# Demo / check
# ----------------------------------------------------------------------------
def _reference_linear(x, layer: PallasLinear):
    # Reference with the same bf16-rounded operands, f32 math (matches MXU semantics).
    xw = x.astype(layer.param_dtype).astype(jnp.float32)
    w = layer.w_t[: layer.in_features, : layer.out_features].astype(jnp.float32)
    b = layer.b[0, : layer.out_features]
    return xw @ w + b


if __name__ == "__main__":
    key = jax.random.PRNGKey(0)
    k1, k2 = jax.random.split(key)

    # 1) Small shape consistent with the module spec: batch=2, hidden=32.
    batch, hidden = 2, 32
    x = jax.random.normal(k1, (batch, hidden), jnp.float32)

    linear = PallasLinear(hidden, hidden)
    wrapped = PassThroughLayer(linear)
    y = jax.block_until_ready(wrapped(x))
    y_ref = _reference_linear(x, linear)
    assert y.shape == (batch, hidden)
    assert jnp.allclose(y, y_ref, atol=1e-4, rtol=1e-4), "linear pass-through mismatch (small)"

    # 2) Slightly larger, non-square case that exercises the multi-tile (M, N, K) grid,
    #    the K-axis accumulator, and the padding path (tn=tk=128 to force grid > 1).
    batch2, in2, out2 = 40, 256, 384
    x2 = jax.random.normal(k2, (batch2, in2), jnp.float32)
    linear2 = PallasLinear(in2, out2, tn=128, tk=128, seed=7)
    wrapped2 = PassThroughLayer(linear2)
    y2 = jax.block_until_ready(wrapped2(x2))
    y2_ref = _reference_linear(x2, linear2)
    assert y2.shape == (batch2, out2)
    assert jnp.allclose(y2, y2_ref, atol=1e-3, rtol=1e-3), "linear pass-through mismatch (tiled)"

    # 3) PassThroughLayer wrapping identity: pure delegation, no kernel launched.
    wrapped_id = PassThroughLayer(PallasIdentity())
    z = jax.block_until_ready(wrapped_id(x))
    assert jnp.array_equal(z, x), "identity pass-through mismatch"

    print("KERNEL_OK")
</pallas_src>

<mosaic_0001>
module attributes {stable_mosaic.version = 11 : i64} {
  func.func @_linear_kernel(%arg0: i32, %arg1: i32, %arg2: i32, %arg3: memref<16x128xbf16, #tpu.memory_space<vmem>>, %arg4: memref<128x128xbf16, #tpu.memory_space<vmem>>, %arg5: memref<1x128xf32, #tpu.memory_space<vmem>>, %arg6: memref<16x128xf32, #tpu.memory_space<vmem>>, %arg7: memref<16x128xf32, #tpu.memory_space<vmem>>) attributes {dimension_semantics = [#tpu.dimension_semantics<parallel>, #tpu.dimension_semantics<parallel>, #tpu.dimension_semantics<arbitrary>], iteration_bounds = array<i64: 1, 1, 1>, scalar_prefetch = 0 : i64, scratch_operands = 1 : i64, tpu.core_type = #tpu.core_type<tc>, window_params = [{transform_indices = @transform_0, window_bounds = array<i64: 16, 128>}, {transform_indices = @transform_1, window_bounds = array<i64: 128, 128>}, {transform_indices = @transform_2, window_bounds = array<i64: 1, 128>}, {transform_indices = @transform_3, window_bounds = array<i64: 16, 128>}]} {
    %c0_i32 = arith.constant 0 : i32
    %0 = arith.cmpi eq, %arg2, %c0_i32 : i32
    %1 = arith.extui %0 : i1 to i32
    %c0_i32_0 = arith.constant 0 : i32
    %2 = arith.cmpi ne, %1, %c0_i32_0 : i32
    scf.if %2 {
      %c0_10 = arith.constant 0 : index
      %c0_11 = arith.constant 0 : index
      %12 = vector.load %arg5[%c0_10, %c0_11] : memref<1x128xf32, #tpu.memory_space<vmem>>, vector<1x128xf32>
      %13 = vector.shape_cast %12 : vector<1x128xf32> to vector<1x128xf32>
      %14 = vector.broadcast %13 : vector<1x128xf32> to vector<16x128xf32>
      %c0_12 = arith.constant 0 : index
      %c0_13 = arith.constant 0 : index
      %15 = vector.load %arg7[%c0_12, %c0_13] : memref<16x128xf32, #tpu.memory_space<vmem>>, vector<16x128xf32>
      tpu.vector_store %arg7[%c0_12, %c0_13], %14 {strides = array<i32>} : memref<16x128xf32, #tpu.memory_space<vmem>>, vector<16x128xf32>,
    } else {
    }
    %c0 = arith.constant 0 : index
    %c0_1 = arith.constant 0 : index
    %3 = vector.load %arg7[%c0, %c0_1] : memref<16x128xf32, #tpu.memory_space<vmem>>, vector<16x128xf32>
    %c0_2 = arith.constant 0 : index
    %c0_3 = arith.constant 0 : index
    %4 = vector.load %arg3[%c0_2, %c0_3] : memref<16x128xbf16, #tpu.memory_space<vmem>>, vector<16x128xbf16>
    %c0_4 = arith.constant 0 : index
    %c0_5 = arith.constant 0 : index
    %5 = vector.load %arg4[%c0_4, %c0_5] : memref<128x128xbf16, #tpu.memory_space<vmem>>, vector<128x128xbf16>
    %cst = arith.constant dense<0.000000e+00> : vector<16x128xf32>
    %6 = tpu.matmul %4, %5, %cst {dimension_numbers = #tpu.dot_dimension_numbers<[1], [0], [0], [1], [0, 0, 1, 1], [], []>} : vector<16x128xbf16>, vector<128x128xbf16>, vector<16x128xf32> -> vector<16x128xf32>
    %7 = arith.addf %3, %6 : vector<16x128xf32>
    %c0_6 = arith.constant 0 : index
    %c0_7 = arith.constant 0 : index
    %8 = vector.load %arg7[%c0_6, %c0_7] : memref<16x128xf32, #tpu.memory_space<vmem>>, vector<16x128xf32>
    tpu.vector_store %arg7[%c0_6, %c0_7], %7 {strides = array<i32>} : memref<16x128xf32, #tpu.memory_space<vmem>>, vector<16x128xf32>,
    %c0_i32_8 = arith.constant 0 : i32
    %9 = arith.cmpi eq, %arg2, %c0_i32_8 : i32
    %10 = arith.extui %9 : i1 to i32
    %c0_i32_9 = arith.constant 0 : i32
    %11 = arith.cmpi ne, %10, %c0_i32_9 : i32
    scf.if %11 {
      %c0_10 = arith.constant 0 : index
      %c0_11 = arith.constant 0 : index
      %12 = vector.load %arg7[%c0_10, %c0_11] : memref<16x128xf32, #tpu.memory_space<vmem>>, vector<16x128xf32>
      %c0_12 = arith.constant 0 : index
      %c0_13 = arith.constant 0 : index
      %13 = vector.load %arg6[%c0_12, %c0_13] : memref<16x128xf32, #tpu.memory_space<vmem>>, vector<16x128xf32>
      tpu.vector_store %arg6[%c0_12, %c0_13], %12 {strides = array<i32>} : memref<16x128xf32, #tpu.memory_space<vmem>>, vector<16x128xf32>,
    } else {
    }
    return
  }
  func.func @transform_0(%arg0: i32, %arg1: i32, %arg2: i32) -> (i32, i32) {
    %c0_i32 = arith.constant 0 : i32
    return %arg0, %arg2 : i32, i32
  }
  func.func @transform_1(%arg0: i32, %arg1: i32, %arg2: i32) -> (i32, i32) {
    %c0_i32 = arith.constant 0 : i32
    return %arg2, %arg1 : i32, i32
  }
  func.func @transform_2(%arg0: i32, %arg1: i32, %arg2: i32) -> (i32, i32) {
    %c0_i32 = arith.constant 0 : i32
    %c0_i32_0 = arith.constant 0 : i32
    return %c0_i32, %arg1 : i32, i32
  }
  func.func @transform_3(%arg0: i32, %arg1: i32, %arg2: i32) -> (i32, i32) {
    %c0_i32 = arith.constant 0 : i32
    return %arg0, %arg1 : i32, i32
  }
}

</mosaic_0001>

<llo_original>
// kernel: tpu_custom_call.1
$region0: #{tpu_custom_call.1}
  #allocation0 [shape = 'u32[]', space=smem, size = 0x4, offset = 0x4, fixed_abs, tag = 'smem constant byte address 0x4 - core index']
  #allocation1 [shape = 'u32[144,128]{1,0:T(1,128)}', space=vmem, size = 0x12000, scoped, tag = 'internal scratch']
  #allocation2 [shape = 'f32[16,128]{1,0:T(8,128)}', space=vmem, size = 0x2000, scoped, tag = 'scratch operand']
  %s0 = inlined_call_operand.hbm [shape: bf16[16,128], index: 0, kind: input, shape index: {}]
  %s1 = inlined_call_operand.hbm [shape: bf16[128,128], index: 1, kind: input, shape index: {}]
  %s2 = inlined_call_operand.vmem [shape: f32[1,128], index: 2, kind: input, shape index: {}]
  %s3 = inlined_call_operand.hbm [shape: f32[16,128], index: 3, kind: output, shape index: {}]
  %s4 = sld [smem:[#allocation0]]
  $region38: #{tpu_custom_call.1} parent=0
    _
  %s6 = ssub.s32 1, %s4
  %s7 = scalar_select 0, %s6, %s4
  $region1: #{tpu_custom_call.1} parent=0
    #allocation3 [shape = 'u8[4096]{0}', space=vmem, size = 0x1000, scoped, tag = 'input window, operand 0, single buffered']
    #allocation4 [shape = 's32[1]{0}', space=sflag, size = 0x4, scoped, tag = 'scoped memory for tpu_custom_call.1']
    #allocation5 [shape = 's32[1]{0}', space=sflag, size = 0x4, scoped, tag = 'scoped memory for tpu_custom_call.1']
    #allocation6 [shape = 'u8[32768]{0}', space=vmem, size = 0x8000, scoped, tag = 'input window, operand 1, single buffered']
    #allocation7 [shape = 's32[1]{0}', space=sflag, size = 0x4, scoped, tag = 'scoped memory for tpu_custom_call.1']
    #allocation8 [shape = 'u8[8192]{0}', space=vmem, size = 0x2000, scoped, tag = 'output window, operand 0, single buffered']
    %8 = vsyncpa [#allocation4], 0
    %9 = vsyncpa [#allocation7], 0
    %10 = vsyncpa [#allocation5], 0
    // Predicated region
    $region2: #{tpu_custom_call.1} parent=1 // pred_check
      _
    $region3: #{tpu_custom_call.1} parent=1 // pred_check_branch
      %12 = sbr.rel (0) target = $region5
    $region4: #{tpu_custom_call.1} parent=1 // pred_region
      %s14 = ssub.s32 128, 128
      %15 = vsyncadd [#allocation4], %s14
      %s16 = sshll.u32 [#allocation3], 4
      %s17 = int_to_ptr.vmem [resolvable:$true] %s16
      %22 = dma.hbm_to_vmem [thread:$0]  %s0, 128, %s17, [#allocation4], 64, 64, 4
    $region5: #{tpu_custom_call.1} parent=1 // pred_fallthru
      _
    // Predicated region
    $region6: #{tpu_custom_call.1} parent=1 // pred_check
      _
    $region7: #{tpu_custom_call.1} parent=1 // pred_check_branch
      %24 = sbr.rel (0) target = $region9
    $region8: #{tpu_custom_call.1} parent=1 // pred_region
      %s26 = ssub.s32 1024, 1024
      %27 = vsyncadd [#allocation7], %s26
      %s28 = sshll.u32 [#allocation6], 4
      %s29 = int_to_ptr.vmem [resolvable:$true] %s28
      %34 = dma.hbm_to_vmem [thread:$0]  %s1, 1024, %s29, [#allocation7], 64, 64, 4
    $region9: #{tpu_custom_call.1} parent=1 // pred_fallthru
      _
    // Predicated region
    $region10: #{tpu_custom_call.1} parent=1 // pred_check
      _
    $region11: #{tpu_custom_call.1} parent=1 // pred_check_branch
      %36 = sbr.rel (0) target = $region13
    $region12: #{tpu_custom_call.1} parent=1 // pred_region
      _
    $region13: #{tpu_custom_call.1} parent=1 // pred_fallthru
      _
    // Predicated region
    $region14: #{tpu_custom_call.1} parent=1 // pred_check
      _
    $region15: #{tpu_custom_call.1} parent=1 // pred_check_branch
      %38 = sbr.rel (0) target = $region17
    $region16: #{tpu_custom_call.1} parent=1 // pred_region
      %39 = dma.done [#allocation4], 128
    $region17: #{tpu_custom_call.1} parent=1 // pred_fallthru
      _
    // Predicated region
    $region18: #{tpu_custom_call.1} parent=1 // pred_check
      _
    $region19: #{tpu_custom_call.1} parent=1 // pred_check_branch
      %41 = sbr.rel (0) target = $region21
    $region20: #{tpu_custom_call.1} parent=1 // pred_region
      %42 = dma.done [#allocation7], 1024
    $region21: #{tpu_custom_call.1} parent=1 // pred_fallthru
      _
    %p44 = scmp.eq.s32.totalorder 0, 0
    // Predicated region
    $region22: #{tpu_custom_call.1} parent=1 // pred_check
      %p45 = pneg %p44
    $region23: #{tpu_custom_call.1} parent=1 // pred_check_branch
      %47 = sbr.rel (%p45) target = $region25
    $region24: #{tpu_custom_call.1} parent=1 // pred_region
      %v48 = vld [vmem:[%s2] sm:$0x1]
      %v50 = vlaneseq
      %v51 = vshrl.u32 %v50, 7
      %v52 = vsub.s32 0, %v51
      %v53 = vrot.slane %v48, %v52
      %55 = vst [vmem:[#allocation2] sm:$0xff] %v53
      %56 = vst [vmem:[#allocation2 + $0x8] sm:$0xff] %v53
    $region25: #{tpu_custom_call.1} parent=1 // pred_fallthru
      _
    %v57 = vld [vmem:[#allocation2] sm:$0xff]
    %v58 = vld [vmem:[#allocation2 + $0x8] sm:$0xff]
    %v59 = vld [vmem:[#allocation3] sm:$0xf]
    %v60 = vld [vmem:[#allocation3 + $0x4] sm:$0xf]
    %v61 = vld [vmem:[#allocation6] sm:$0xf]
    %v62 = vld [vmem:[#allocation6 + $0x4] sm:$0xf]
    %v63 = vld [vmem:[#allocation6 + $0x8] sm:$0xf]
    %v64 = vld [vmem:[#allocation6 + $0xc] sm:$0xf]
    %v65 = vld [vmem:[#allocation6 + $0x10] sm:$0xf]
    %v66 = vld [vmem:[#allocation6 + $0x14] sm:$0xf]
    %v67 = vld [vmem:[#allocation6 + $0x18] sm:$0xf]
    %v68 = vld [vmem:[#allocation6 + $0x1c] sm:$0xf]
    %v69 = vld [vmem:[#allocation6 + $0x20] sm:$0xf]
    %v70 = vld [vmem:[#allocation6 + $0x24] sm:$0xf]
    %v71 = vld [vmem:[#allocation6 + $0x28] sm:$0xf]
    %v72 = vld [vmem:[#allocation6 + $0x2c] sm:$0xf]
    %v73 = vld [vmem:[#allocation6 + $0x30] sm:$0xf]
    %v74 = vld [vmem:[#allocation6 + $0x34] sm:$0xf]
    %v75 = vld [vmem:[#allocation6 + $0x38] sm:$0xf]
    %v76 = vld [vmem:[#allocation6 + $0x3c] sm:$0xf]
    %v79 = vunpack.c.l.b16 %v59
    %v80 = vunpack.c.l.b16 %v60
    %v81 = vpack.c.b16 %v80, %v79
    %v99 = vunpack.c.l.b16 %v61
    %v100 = vunpack.c.l.b16 %v62
    %v101 = vunpack.c.l.b16 %v63
    %v102 = vunpack.c.l.b16 %v64
    %v103 = vunpack.c.l.b16 %v65
    %v104 = vunpack.c.l.b16 %v66
    %v105 = vunpack.c.l.b16 %v67
    %v106 = vunpack.c.l.b16 %v68
    %v107 = vunpack.c.l.b16 %v69
    %v108 = vunpack.c.l.b16 %v70
    %v109 = vunpack.c.l.b16 %v71
    %v110 = vunpack.c.l.b16 %v72
    %v111 = vunpack.c.l.b16 %v73
    %v112 = vunpack.c.l.b16 %v74
    %v113 = vunpack.c.l.b16 %v75
    %v114 = vunpack.c.l.b16 %v76
    %v115 = vpack.c.b16 %v100, %v99
    %v116 = vpack.c.b16 %v102, %v101
    %v117 = vpack.c.b16 %v104, %v103
    %v118 = vpack.c.b16 %v106, %v105
    %v119 = vpack.c.b16 %v108, %v107
    %v120 = vpack.c.b16 %v110, %v109
    %v121 = vpack.c.b16 %v112, %v111
    %v122 = vpack.c.b16 %v114, %v113
    %131 = vmatprep.subr.bf16.mxu0 0
    %132 = vmatpush1.bf16.msra.mxu0 %v115
    %133 = vmatprep.subr.bf16.mxu0 0
    %134 = vmatpush1.bf16.msra.mxu0 %v116
    %135 = vmatprep.subr.bf16.mxu0 0
    %136 = vmatpush1.bf16.msra.mxu0 %v117
    %137 = vmatprep.subr.bf16.mxu0 0
    %138 = vmatpush1.bf16.msra.mxu0 %v118
    %139 = vmatprep.subr.bf16.mxu0 0
    %140 = vmatpush1.bf16.msra.mxu0 %v119
    %141 = vmatprep.subr.bf16.mxu0 0
    %142 = vmatpush1.bf16.msra.mxu0 %v120
    %143 = vmatprep.subr.bf16.mxu0 0
    %144 = vmatpush1.bf16.msra.mxu0 %v121
    %145 = vmatprep.subr.bf16.mxu0 0
    %146 = vmatpush1.bf16.msra.mxu0 %v122
    %147 = vmatprep.subr.bf16.mxu0 0
    %148 = vmatpush1.bf16.msra.mxu0 0
    %149 = vmatprep.subr.bf16.mxu0 0
    %150 = vmatpush1.bf16.msra.mxu0 0
    %151 = vmatprep.subr.bf16.mxu0 0
    %152 = vmatpush1.bf16.msra.mxu0 0
    %153 = vmatprep.subr.bf16.mxu0 0
    %154 = vmatpush1.bf16.msra.mxu0 0
    %155 = vmatprep.subr.bf16.mxu0 0
    %156 = vmatpush1.bf16.msra.mxu0 0
    %157 = vmatprep.subr.bf16.mxu0 0
    %158 = vmatpush1.bf16.msra.mxu0 0
    %159 = vmatprep.subr.bf16.mxu0 0
    %160 = vmatpush1.bf16.msra.mxu0 0
    %161 = vmatprep.subr.bf16.mxu0 0
    %162 = vmatpush1.bf16.msra.mxu0 0
    %163 = vmatprep.mubr.bf16.mxu0 0
    %164 = vmatmul.mubr.bf16.gmra.mrb[0].mxu0 %v81
    %v165 = vpop.f32.mrb[0].mxu0
    %v166 = vadd.f32 0.0, %v165
    %v167 = vpop.f32.mrb[0].mxu0
    %v168 = vpop.f32.mrb[0].mxu0
    %v169 = vadd.f32 0.0, %v168
    %v170 = vpop.f32.mrb[0].mxu0
    %171 = vdwg.mxu0
    %v172 = vadd.f32 %v57, %v166
    %v173 = vadd.f32 %v58, %v169
    %174 = vst [vmem:[#allocation2] sm:$0xff] %v172
    %175 = vst [vmem:[#allocation2 + $0x8] sm:$0xff] %v173
    // Predicated region
    $region26: #{tpu_custom_call.1} parent=1 // pred_check
      %p176 = pneg %p44
    $region27: #{tpu_custom_call.1} parent=1 // pred_check_branch
      %178 = sbr.rel (%p176) target = $region29
    $region28: #{tpu_custom_call.1} parent=1 // pred_region
      %v179 = vld [vmem:[#allocation2] sm:$0xff]
      %v180 = vld [vmem:[#allocation2 + $0x8] sm:$0xff]
      %181 = vst [vmem:[#allocation8] sm:$0xff] %v179
      %182 = vst [vmem:[#allocation8 + $0x8] sm:$0xff] %v180
    $region29: #{tpu_custom_call.1} parent=1 // pred_fallthru
      _
    // Predicated region
    $region30: #{tpu_custom_call.1} parent=1 // pred_check
      _
    $region31: #{tpu_custom_call.1} parent=1 // pred_check_branch
      %184 = sbr.rel (0) target = $region33
    $region32: #{tpu_custom_call.1} parent=1 // pred_region
      %s186 = ssub.s32 256, 256
      %187 = vsyncadd [#allocation5], %s186
      %s188 = sshll.u32 [#allocation8], 4
      %s189 = int_to_ptr.vmem [resolvable:$true] %s188
      %194 = dma.vmem_to_hbm [thread:$0]  %s189, 256, %s3, [#allocation5], 128, 128, 8
    $region33: #{tpu_custom_call.1} parent=1 // pred_fallthru
      _
    // Predicated region
    $region34: #{tpu_custom_call.1} parent=1 // pred_check
      _
    $region35: #{tpu_custom_call.1} parent=1 // pred_check_branch
      %196 = sbr.rel (0) target = $region37
    $region36: #{tpu_custom_call.1} parent=1 // pred_region
      %197 = dma.done [#allocation5], 256
    $region37: #{tpu_custom_call.1} parent=1 // pred_fallthru
      _
    %198 = vsyncpa [#allocation4], 1
    %199 = vsyncpa [#allocation7], 1
    %200 = vsyncpa [#allocation5], 1

</llo_original>
